<compile_context>
chip_gen: v7x
topology: tpu7x:2x2x1
jax: 0.10.0
libtpu: 0.0.40
codegen_flags: <defaults>
</compile_context>

<pallas_src>
import jax
import jax.numpy as jnp
from jax.experimental import pallas as pl
from jax.experimental.pallas import tpu as pltpu


NEG_SLOPE = 0.2                       # LeakyReLU negative slope of the module
LANE = 128                            # TPU lane width
VMEM_BUDGET_BYTES = 48 * 1024 * 1024  # <= v7x physical VMEM (64 MiB per TC)


def _round_up(n, m):
    return (n + m - 1) // m * m


def _cdiv(a, b):
    return -(-a // b)


def _leaky_relu(x):
    # max(x, 0.2*x) == LeakyReLU(0.2) exactly for slope in (0, 1).
    return jnp.maximum(x, NEG_SLOPE * x)


def mlp_kernel(x_ref, w0_ref, wmid_ref, w3_ref, bmid_ref, b3_ref, o_ref):
    """Fused 4-layer MLP forward on one batch tile.

    x_ref:    (TB, nin)      input dtype (cast to compute dtype in-kernel)
    w0_ref:   (nin, P_h)     compute dtype (zero-padded columns)
    wmid_ref: (2, P_h, P_h)  compute dtype (zero-padded)
    w3_ref:   (P_h, P_out)   compute dtype (zero-padded)
    bmid_ref: (3, P_h)       f32 (zero-padded)
    b3_ref:   (1, P_out)     f32 (zero-padded)
    o_ref:    (TB, P_out)    out dtype; padded lanes are exactly 0
    """
    cdt = w0_ref.dtype  # matmul operand dtype; accumulation stays f32

    h = jnp.dot(x_ref[...].astype(cdt), w0_ref[...],
                preferred_element_type=jnp.float32)
    h = _leaky_relu(h + bmid_ref[0:1, :])

    h = jnp.dot(h.astype(cdt), wmid_ref[0], preferred_element_type=jnp.float32)
    h = _leaky_relu(h + bmid_ref[1:2, :])

    h = jnp.dot(h.astype(cdt), wmid_ref[1], preferred_element_type=jnp.float32)
    h = _leaky_relu(h + bmid_ref[2:3, :])

    y = jnp.dot(h.astype(cdt), w3_ref[...], preferred_element_type=jnp.float32)
    o_ref[...] = (y + b3_ref[...]).astype(o_ref.dtype)


def pack_params(params, p_h, p_out, compute_dtype):
    """Zero-pad weights/biases to per-layer padded widths and stack them."""
    (w0, b0), (w1, b1), (w2, b2), (w3, b3) = params
    nin = w0.shape[0]

    def pad2(w, rows, cols):
        out = jnp.zeros((rows, cols), jnp.float32)
        return out.at[: w.shape[0], : w.shape[1]].set(w)

    def pad1(b, cols):
        out = jnp.zeros((cols,), jnp.float32)
        return out.at[: b.reshape(-1).shape[0]].set(b.reshape(-1))

    w0_p = pad2(w0, nin, p_h).astype(compute_dtype)                     # (nin, P_h)
    w_mid = jnp.stack([pad2(w1, p_h, p_h),
                       pad2(w2, p_h, p_h)]).astype(compute_dtype)       # (2, P_h, P_h)
    w3_p = pad2(w3, p_h, p_out).astype(compute_dtype)                   # (P_h, P_out)
    b_mid = jnp.stack([pad1(b0, p_h), pad1(b1, p_h), pad1(b2, p_h)])    # (3, P_h) f32
    b3_p = pad1(b3, p_out).reshape(1, p_out)                            # (1, P_out) f32
    return w0_p, w_mid, w3_p, b_mid, b3_p


def mlp_forward(x, params, *, tb=2048, compute_dtype=jnp.bfloat16,
                out_dtype=jnp.float32):
    """x: (B, nin). params: list of 4 (W (in,out), b (1,out)) tuples.

    compute_dtype=jnp.bfloat16 is the right choice on v5e/v6e/v7x alike: only
    matmul operands are bf16 (f32 MXU accumulation), bias add + LeakyReLU are
    f32.  Pass out_dtype=jnp.bfloat16 to halve the output HBM writeback (the
    largest stream) when downstream consumers tolerate it.
    """
    B, nin = x.shape
    nh = params[0][0].shape[1]
    nout = params[-1][0].shape[1]

    p_h = _round_up(nh, LANE)
    p_out = _round_up(nout, LANE)

    c_size = jnp.dtype(compute_dtype).itemsize
    o_size = jnp.dtype(out_dtype).itemsize
    x_size = jnp.dtype(x.dtype).itemsize

    # Weight/bias VMEM footprint.  Counted double-buffered (conservative) so
    # the budget stays valid even if the single-buffer request below falls
    # back to default double buffering.
    w_bytes = (nin * p_h + 2 * p_h * p_h + p_h * p_out) * c_size
    b_bytes = (3 * p_h + p_out) * 4
    fixed_bytes = 2 * (w_bytes + b_bytes)
    if fixed_bytes > VMEM_BUDGET_BYTES:
        # TODO(synk): add a K/N-tiled fallback over the hidden dim for nh so
        # large that the weight stack itself no longer fits VMEM-resident.
        raise NotImplementedError(
            f"weight stack ({fixed_bytes} bytes) exceeds the VMEM budget; "
            "the VMEM-resident fused MLP needs a K/N-tiled fallback")

    # Batch tile: large enough to amortize the ~0.35 us/grid-step pipeline
    # overhead, small enough that double-buffered x/out tiles plus f32
    # intermediates fit the VMEM budget (explicit so v7x's smaller VMEM does
    # not silently regress tiling).
    per_row = 2 * nin * x_size + 2 * p_out * o_size + 3 * p_h * 4
    tb_cap = max(8, (VMEM_BUDGET_BYTES - fixed_bytes) // per_row // 8 * 8)
    tb = int(min(tb, tb_cap))

    # Split B as evenly as possible over the grid steps so batch-padding waste
    # is < 8 rows per step (instead of up to tb-1 junk rows).
    n_steps = _cdiv(B, tb)
    tb_eff = _round_up(_cdiv(B, n_steps), 8)
    b_pad = n_steps * tb_eff

    # Only batch padding; features stay at nin (block dim == full array dim is
    # legal) and the cast to compute dtype happens in-kernel, so there is no
    # extra wrapper-side pad/cast HBM pass over x.
    x_pad = x if b_pad == B else jnp.pad(x, ((0, b_pad - B), (0, 0)))

    w0_p, w_mid, w3_p, b_mid, b3_p = pack_params(params, p_h, p_out, compute_dtype)

    def _resident_spec(shape, pipeline_mode):
        zeros = (0,) * len(shape)
        if pipeline_mode is None:
            return pl.BlockSpec(shape, lambda i: zeros)
        return pl.BlockSpec(shape, lambda i: zeros, pipeline_mode=pipeline_mode)

    def _run(single_buffer_weights):
        # Grid-invariant weights/biases are fetched once; single-buffer them so
        # they don't claim 2x VMEM (matters on v7x at large nh).
        pm = pl.Buffered(1) if single_buffer_weights else None
        return pl.pallas_call(
            mlp_kernel,
            out_shape=jax.ShapeDtypeStruct((b_pad, p_out), out_dtype),
            grid=(n_steps,),
            in_specs=[
                # x tile: pipelined along the batch grid axis.
                pl.BlockSpec((tb_eff, nin), lambda i: (i, 0)),
                _resident_spec((nin, p_h), pm),
                _resident_spec((2, p_h, p_h), pm),
                _resident_spec((p_h, p_out), pm),
                _resident_spec((3, p_h), pm),
                _resident_spec((1, p_out), pm),
            ],
            out_specs=pl.BlockSpec((tb_eff, p_out), lambda i: (i, 0)),
            compiler_params=pltpu.CompilerParams(
                dimension_semantics=("parallel",),   # v7x: shard batch over 2 TCs
                vmem_limit_bytes=VMEM_BUDGET_BYTES,
            ),
        )(x_pad, w0_p, w_mid, w3_p, b_mid, b3_p)

    try:
        out = _run(True)
    except Exception:
        # This jax build doesn't accept BlockSpec(pipeline_mode=pl.Buffered(1));
        # default double buffering is still correct and within the budget above.
        out = _run(False)

    # Slice away batch padding and padded output lanes (padded lanes are 0).
    return out[:B, :nout]


def init_mlp_params(key, nin, nout, nh):
    """Deterministic init mimicking PyTorch nn.Linear default
    (uniform(-1/sqrt(fan_in), 1/sqrt(fan_in)) for both W and b).
    Weights stored as (in, out)."""
    dims = [(nin, nh), (nh, nh), (nh, nh), (nh, nout)]
    params = []
    for (fan_in, fan_out) in dims:
        key, kw, kb = jax.random.split(key, 3)
        bound = 1.0 / jnp.sqrt(jnp.float32(fan_in))
        w = jax.random.uniform(kw, (fan_in, fan_out), jnp.float32, -bound, bound)
        b = jax.random.uniform(kb, (1, fan_out), jnp.float32, -bound, bound)
        params.append((w, b))
    return params


def mlp_reference(x, params, compute_dtype=jnp.float32):
    """Pure-JAX reference with the same operand casting as the kernel."""
    h = x
    for i, (w, b) in enumerate(params):
        h = jnp.dot(h.astype(compute_dtype), w.astype(compute_dtype),
                    preferred_element_type=jnp.float32) + b.reshape(1, -1)
        if i < len(params) - 1:
            h = jnp.where(h >= 0, h, NEG_SLOPE * h)
    return h


if __name__ == "__main__":
    nin, nout, nh = 4, 4, 32
    batch = 8

    key = jax.random.PRNGKey(0)
    key, kx = jax.random.split(key)
    x = jax.random.normal(kx, (batch, nin), jnp.float32)

    params = init_mlp_params(key, nin, nout, nh)

    out = mlp_forward(x, params)                       # bf16 matmuls, f32 accum
    out = jax.block_until_ready(out)

    # Precision-matched reference (same bf16 operand casts, f32 accumulation).
    ref_bf16 = mlp_reference(x, params, jnp.bfloat16)
    # Full-f32 reference for a loose sanity check of the bf16 path.
    ref_f32 = mlp_reference(x, params, jnp.float32)

    assert out.shape == (batch, nout)
    assert out.dtype == jnp.float32
    assert jnp.allclose(out, ref_bf16, atol=1e-4, rtol=1e-4), \
        "mismatch vs precision-matched reference"
    assert jnp.allclose(out, ref_f32, atol=5e-2, rtol=5e-2), \
        "bf16 path diverged from f32 reference"

    print("KERNEL_OK")
</pallas_src>

<mosaic_0001>
module attributes {stable_mosaic.version = 11 : i64} {
  func.func @mlp_kernel(%arg0: i32, %arg1: memref<8x4xf32, #tpu.memory_space<vmem>>, %arg2: memref<4x128xbf16, #tpu.memory_space<vmem>>, %arg3: memref<2x128x128xbf16, #tpu.memory_space<vmem>>, %arg4: memref<128x128xbf16, #tpu.memory_space<vmem>>, %arg5: memref<3x128xf32, #tpu.memory_space<vmem>>, %arg6: memref<1x128xf32, #tpu.memory_space<vmem>>, %arg7: memref<8x128xf32, #tpu.memory_space<vmem>>) attributes {dimension_semantics = [#tpu.dimension_semantics<parallel>], iteration_bounds = array<i64: 1>, scalar_prefetch = 0 : i64, scratch_operands = 0 : i64, tpu.core_type = #tpu.core_type<tc>, window_params = [{transform_indices = @transform_0, window_bounds = array<i64: 8, 4>}, {pipeline_mode = #tpu.pipeline_mode<synchronous>, transform_indices = @transform_1, window_bounds = array<i64: 4, 128>}, {pipeline_mode = #tpu.pipeline_mode<synchronous>, transform_indices = @transform_2, window_bounds = array<i64: 2, 128, 128>}, {pipeline_mode = #tpu.pipeline_mode<synchronous>, transform_indices = @transform_3, window_bounds = array<i64: 128, 128>}, {pipeline_mode = #tpu.pipeline_mode<synchronous>, transform_indices = @transform_4, window_bounds = array<i64: 3, 128>}, {pipeline_mode = #tpu.pipeline_mode<synchronous>, transform_indices = @transform_5, window_bounds = array<i64: 1, 128>}, {transform_indices = @transform_6, window_bounds = array<i64: 8, 128>}]} {
    %c0 = arith.constant 0 : index
    %c0_0 = arith.constant 0 : index
    %0 = vector.load %arg1[%c0, %c0_0] : memref<8x4xf32, #tpu.memory_space<vmem>>, vector<8x4xf32>
    %1 = arith.truncf %0 : vector<8x4xf32> to vector<8x4xbf16>
    %c0_1 = arith.constant 0 : index
    %c0_2 = arith.constant 0 : index
    %2 = vector.load %arg2[%c0_1, %c0_2] : memref<4x128xbf16, #tpu.memory_space<vmem>>, vector<4x128xbf16>
    %cst = arith.constant dense<0.000000e+00> : vector<8x128xf32>
    %3 = tpu.matmul %1, %2, %cst {dimension_numbers = #tpu.dot_dimension_numbers<[1], [0], [0], [1], [0, 0, 1, 1], [], []>} : vector<8x4xbf16>, vector<4x128xbf16>, vector<8x128xf32> -> vector<8x128xf32>
    %c0_3 = arith.constant 0 : index
    %c0_4 = arith.constant 0 : index
    %4 = vector.load %arg5[%c0_3, %c0_4] : memref<3x128xf32, #tpu.memory_space<vmem>>, vector<1x128xf32>
    %5 = vector.broadcast %4 : vector<1x128xf32> to vector<8x128xf32>
    %6 = arith.addf %3, %5 : vector<8x128xf32>
    %cst_5 = arith.constant 2.000000e-01 : f32
    %7 = vector.broadcast %cst_5 : f32 to vector<8x128xf32>
    %8 = arith.mulf %7, %6 : vector<8x128xf32>
    %9 = arith.maximumf %6, %8 : vector<8x128xf32>
    %10 = arith.truncf %9 : vector<8x128xf32> to vector<8x128xbf16>
    %c0_6 = arith.constant 0 : index
    %c0_7 = arith.constant 0 : index
    %c0_8 = arith.constant 0 : index
    %11 = vector.load %arg3[%c0_6, %c0_7, %c0_8] : memref<2x128x128xbf16, #tpu.memory_space<vmem>>, vector<1x128x128xbf16>
    %12 = vector.shape_cast %11 : vector<1x128x128xbf16> to vector<128x128xbf16>
    %cst_9 = arith.constant dense<0.000000e+00> : vector<8x128xf32>
    %13 = tpu.matmul %10, %12, %cst_9 {dimension_numbers = #tpu.dot_dimension_numbers<[1], [0], [0], [1], [0, 0, 1, 1], [], []>} : vector<8x128xbf16>, vector<128x128xbf16>, vector<8x128xf32> -> vector<8x128xf32>
    %c1 = arith.constant 1 : index
    %c0_10 = arith.constant 0 : index
    %14 = vector.load %arg5[%c1, %c0_10] : memref<3x128xf32, #tpu.memory_space<vmem>>, vector<1x128xf32>
    %15 = vector.broadcast %14 : vector<1x128xf32> to vector<8x128xf32>
    %16 = arith.addf %13, %15 : vector<8x128xf32>
    %cst_11 = arith.constant 2.000000e-01 : f32
    %17 = vector.broadcast %cst_11 : f32 to vector<8x128xf32>
    %18 = arith.mulf %17, %16 : vector<8x128xf32>
    %19 = arith.maximumf %16, %18 : vector<8x128xf32>
    %20 = arith.truncf %19 : vector<8x128xf32> to vector<8x128xbf16>
    %c1_12 = arith.constant 1 : index
    %c0_13 = arith.constant 0 : index
    %c0_14 = arith.constant 0 : index
    %21 = vector.load %arg3[%c1_12, %c0_13, %c0_14] : memref<2x128x128xbf16, #tpu.memory_space<vmem>>, vector<1x128x128xbf16>
    %22 = vector.shape_cast %21 : vector<1x128x128xbf16> to vector<128x128xbf16>
    %cst_15 = arith.constant dense<0.000000e+00> : vector<8x128xf32>
    %23 = tpu.matmul %20, %22, %cst_15 {dimension_numbers = #tpu.dot_dimension_numbers<[1], [0], [0], [1], [0, 0, 1, 1], [], []>} : vector<8x128xbf16>, vector<128x128xbf16>, vector<8x128xf32> -> vector<8x128xf32>
    %c2 = arith.constant 2 : index
    %c0_16 = arith.constant 0 : index
    %24 = vector.load %arg5[%c2, %c0_16] : memref<3x128xf32, #tpu.memory_space<vmem>>, vector<1x128xf32>
    %25 = vector.broadcast %24 : vector<1x128xf32> to vector<8x128xf32>
    %26 = arith.addf %23, %25 : vector<8x128xf32>
    %cst_17 = arith.constant 2.000000e-01 : f32
    %27 = vector.broadcast %cst_17 : f32 to vector<8x128xf32>
    %28 = arith.mulf %27, %26 : vector<8x128xf32>
    %29 = arith.maximumf %26, %28 : vector<8x128xf32>
    %30 = arith.truncf %29 : vector<8x128xf32> to vector<8x128xbf16>
    %c0_18 = arith.constant 0 : index
    %c0_19 = arith.constant 0 : index
    %31 = vector.load %arg4[%c0_18, %c0_19] : memref<128x128xbf16, #tpu.memory_space<vmem>>, vector<128x128xbf16>
    %cst_20 = arith.constant dense<0.000000e+00> : vector<8x128xf32>
    %32 = tpu.matmul %30, %31, %cst_20 {dimension_numbers = #tpu.dot_dimension_numbers<[1], [0], [0], [1], [0, 0, 1, 1], [], []>} : vector<8x128xbf16>, vector<128x128xbf16>, vector<8x128xf32> -> vector<8x128xf32>
    %c0_21 = arith.constant 0 : index
    %c0_22 = arith.constant 0 : index
    %33 = vector.load %arg6[%c0_21, %c0_22] : memref<1x128xf32, #tpu.memory_space<vmem>>, vector<1x128xf32>
    %34 = vector.broadcast %33 : vector<1x128xf32> to vector<8x128xf32>
    %35 = arith.addf %32, %34 : vector<8x128xf32>
    %c0_23 = arith.constant 0 : index
    %c0_24 = arith.constant 0 : index
    %36 = vector.load %arg7[%c0_23, %c0_24] : memref<8x128xf32, #tpu.memory_space<vmem>>, vector<8x128xf32>
    tpu.vector_store %arg7[%c0_23, %c0_24], %35 {strides = array<i32>} : memref<8x128xf32, #tpu.memory_space<vmem>>, vector<8x128xf32>,
    return
  }
  func.func @transform_0(%arg0: i32) -> (i32, i32) {
    %c0_i32 = arith.constant 0 : i32
    %c0_i32_0 = arith.constant 0 : i32
    return %arg0, %c0_i32 : i32, i32
  }
  func.func @transform_1(%arg0: i32) -> (i32, i32) {
    %c0_i32 = arith.constant 0 : i32
    %c0_i32_0 = arith.constant 0 : i32
    %c0_i32_1 = arith.constant 0 : i32
    return %c0_i32, %c0_i32_0 : i32, i32
  }
  func.func @transform_2(%arg0: i32) -> (i32, i32, i32) {
    %c0_i32 = arith.constant 0 : i32
    %c0_i32_0 = arith.constant 0 : i32
    %c0_i32_1 = arith.constant 0 : i32
    %c0_i32_2 = arith.constant 0 : i32
    return %c0_i32, %c0_i32_0, %c0_i32_1 : i32, i32, i32
  }
  func.func @transform_3(%arg0: i32) -> (i32, i32) {
    %c0_i32 = arith.constant 0 : i32
    %c0_i32_0 = arith.constant 0 : i32
    %c0_i32_1 = arith.constant 0 : i32
    return %c0_i32, %c0_i32_0 : i32, i32
  }
  func.func @transform_4(%arg0: i32) -> (i32, i32) {
    %c0_i32 = arith.constant 0 : i32
    %c0_i32_0 = arith.constant 0 : i32
    %c0_i32_1 = arith.constant 0 : i32
    return %c0_i32, %c0_i32_0 : i32, i32
  }
  func.func @transform_5(%arg0: i32) -> (i32, i32) {
    %c0_i32 = arith.constant 0 : i32
    %c0_i32_0 = arith.constant 0 : i32
    %c0_i32_1 = arith.constant 0 : i32
    return %c0_i32, %c0_i32_0 : i32, i32
  }
  func.func @transform_6(%arg0: i32) -> (i32, i32) {
    %c0_i32 = arith.constant 0 : i32
    %c0_i32_0 = arith.constant 0 : i32
    return %arg0, %c0_i32 : i32, i32
  }
}

module attributes {stable_mosaic.version = 11 : i64} {
  func.func @mlp_kernel(%arg0: i32, %arg1: memref<8x4xf32, #tpu.memory_space<vmem>>, %arg2: memref<4x128xbf16, #tpu.memory_space<vmem>>, %arg3: memref<2x128x128xbf16, #tpu.memory_space<vmem>>, %arg4: memref<128x128xbf16, #tpu.memory_space<vmem>>, %arg5: memref<3x128xf32, #tpu.memory_space<vmem>>, %arg6: memref<1x128xf32, #tpu.memory_space<vmem>>, %arg7: memref<8x128xf32, #tpu.memory_space<vmem>>) attributes {dimension_semantics = [#tpu.dimension_semantics<parallel>], iteration_bounds = array<i64: 1>, scalar_prefetch = 0 : i64, scratch_operands = 0 : i64, tpu.core_type = #tpu.core_type<tc>, window_params = [{transform_indices = @transform_0, window_bounds = array<i64: 8, 4>}, {pipeline_mode = #tpu.pipeline_mode<synchronous>, transform_indices = @transform_1, window_bounds = array<i64: 4, 128>}, {pipeline_mode = #tpu.pipeline_mode<synchronous>, transform_indices = @transform_2, window_bounds = array<i64: 2, 128, 128>}, {pipeline_mode = #tpu.pipeline_mode<synchronous>, transform_indices = @transform_3, window_bounds = array<i64: 128, 128>}, {pipeline_mode = #tpu.pipeline_mode<synchronous>, transform_indices = @transform_4, window_bounds = array<i64: 3, 128>}, {pipeline_mode = #tpu.pipeline_mode<synchronous>, transform_indices = @transform_5, window_bounds = array<i64: 1, 128>}, {transform_indices = @transform_6, window_bounds = array<i64: 8, 128>}]} {
    %c0 = arith.constant 0 : index
    %c0_0 = arith.constant 0 : index
    %0 = vector.load %arg1[%c0, %c0_0] : memref<8x4xf32, #tpu.memory_space<vmem>>, vector<8x4xf32>
    %1 = arith.truncf %0 : vector<8x4xf32> to vector<8x4xbf16>
    %c0_1 = arith.constant 0 : index
    %c0_2 = arith.constant 0 : index
    %2 = vector.load %arg2[%c0_1, %c0_2] : memref<4x128xbf16, #tpu.memory_space<vmem>>, vector<4x128xbf16>
    %cst = arith.constant dense<0.000000e+00> : vector<8x128xf32>
    %3 = tpu.matmul %1, %2, %cst {dimension_numbers = #tpu.dot_dimension_numbers<[1], [0], [0], [1], [0, 0, 1, 1], [], []>} : vector<8x4xbf16>, vector<4x128xbf16>, vector<8x128xf32> -> vector<8x128xf32>
    %c0_3 = arith.constant 0 : index
    %c0_4 = arith.constant 0 : index
    %4 = vector.load %arg5[%c0_3, %c0_4] : memref<3x128xf32, #tpu.memory_space<vmem>>, vector<1x128xf32>
    %5 = vector.broadcast %4 : vector<1x128xf32> to vector<8x128xf32>
    %6 = arith.addf %3, %5 : vector<8x128xf32>
    %cst_5 = arith.constant 2.000000e-01 : f32
    %7 = vector.broadcast %cst_5 : f32 to vector<8x128xf32>
    %8 = arith.mulf %7, %6 : vector<8x128xf32>
    %9 = arith.maximumf %6, %8 : vector<8x128xf32>
    %10 = arith.truncf %9 : vector<8x128xf32> to vector<8x128xbf16>
    %c0_6 = arith.constant 0 : index
    %c0_7 = arith.constant 0 : index
    %c0_8 = arith.constant 0 : index
    %11 = vector.load %arg3[%c0_6, %c0_7, %c0_8] : memref<2x128x128xbf16, #tpu.memory_space<vmem>>, vector<1x128x128xbf16>
    %12 = vector.shape_cast %11 : vector<1x128x128xbf16> to vector<128x128xbf16>
    %cst_9 = arith.constant dense<0.000000e+00> : vector<8x128xf32>
    %13 = tpu.matmul %10, %12, %cst_9 {dimension_numbers = #tpu.dot_dimension_numbers<[1], [0], [0], [1], [0, 0, 1, 1], [], []>} : vector<8x128xbf16>, vector<128x128xbf16>, vector<8x128xf32> -> vector<8x128xf32>
    %c1 = arith.constant 1 : index
    %c0_10 = arith.constant 0 : index
    %14 = vector.load %arg5[%c1, %c0_10] : memref<3x128xf32, #tpu.memory_space<vmem>>, vector<1x128xf32>
    %15 = vector.broadcast %14 : vector<1x128xf32> to vector<8x128xf32>
    %16 = arith.addf %13, %15 : vector<8x128xf32>
    %cst_11 = arith.constant 2.000000e-01 : f32
    %17 = vector.broadcast %cst_11 : f32 to vector<8x128xf32>
    %18 = arith.mulf %17, %16 : vector<8x128xf32>
    %19 = arith.maximumf %16, %18 : vector<8x128xf32>
    %20 = arith.truncf %19 : vector<8x128xf32> to vector<8x128xbf16>
    %c1_12 = arith.constant 1 : index
    %c0_13 = arith.constant 0 : index
    %c0_14 = arith.constant 0 : index
    %21 = vector.load %arg3[%c1_12, %c0_13, %c0_14] : memref<2x128x128xbf16, #tpu.memory_space<vmem>>, vector<1x128x128xbf16>
    %22 = vector.shape_cast %21 : vector<1x128x128xbf16> to vector<128x128xbf16>
    %cst_15 = arith.constant dense<0.000000e+00> : vector<8x128xf32>
    %23 = tpu.matmul %20, %22, %cst_15 {dimension_numbers = #tpu.dot_dimension_numbers<[1], [0], [0], [1], [0, 0, 1, 1], [], []>} : vector<8x128xbf16>, vector<128x128xbf16>, vector<8x128xf32> -> vector<8x128xf32>
    %c2 = arith.constant 2 : index
    %c0_16 = arith.constant 0 : index
    %24 = vector.load %arg5[%c2, %c0_16] : memref<3x128xf32, #tpu.memory_space<vmem>>, vector<1x128xf32>
    %25 = vector.broadcast %24 : vector<1x128xf32> to vector<8x128xf32>
    %26 = arith.addf %23, %25 : vector<8x128xf32>
    %cst_17 = arith.constant 2.000000e-01 : f32
    %27 = vector.broadcast %cst_17 : f32 to vector<8x128xf32>
    %28 = arith.mulf %27, %26 : vector<8x128xf32>
    %29 = arith.maximumf %26, %28 : vector<8x128xf32>
    %30 = arith.truncf %29 : vector<8x128xf32> to vector<8x128xbf16>
    %c0_18 = arith.constant 0 : index
    %c0_19 = arith.constant 0 : index
    %31 = vector.load %arg4[%c0_18, %c0_19] : memref<128x128xbf16, #tpu.memory_space<vmem>>, vector<128x128xbf16>
    %cst_20 = arith.constant dense<0.000000e+00> : vector<8x128xf32>
    %32 = tpu.matmul %30, %31, %cst_20 {dimension_numbers = #tpu.dot_dimension_numbers<[1], [0], [0], [1], [0, 0, 1, 1], [], []>} : vector<8x128xbf16>, vector<128x128xbf16>, vector<8x128xf32> -> vector<8x128xf32>
    %c0_21 = arith.constant 0 : index
    %c0_22 = arith.constant 0 : index
    %33 = vector.load %arg6[%c0_21, %c0_22] : memref<1x128xf32, #tpu.memory_space<vmem>>, vector<1x128xf32>
    %34 = vector.broadcast %33 : vector<1x128xf32> to vector<8x128xf32>
    %35 = arith.addf %32, %34 : vector<8x128xf32>
    %c0_23 = arith.constant 0 : index
    %c0_24 = arith.constant 0 : index
    %36 = vector.load %arg7[%c0_23, %c0_24] : memref<8x128xf32, #tpu.memory_space<vmem>>, vector<8x128xf32>
    tpu.vector_store %arg7[%c0_23, %c0_24], %35 {strides = array<i32>} : memref<8x128xf32, #tpu.memory_space<vmem>>, vector<8x128xf32>,
    return
  }
  func.func @transform_0(%arg0: i32) -> (i32, i32) {
    %c0_i32 = arith.constant 0 : i32
    %c0_i32_0 = arith.constant 0 : i32
    return %arg0, %c0_i32 : i32, i32
  }
  func.func @transform_1(%arg0: i32) -> (i32, i32) {
    %c0_i32 = arith.constant 0 : i32
    %c0_i32_0 = arith.constant 0 : i32
    %c0_i32_1 = arith.constant 0 : i32
    return %c0_i32, %c0_i32_0 : i32, i32
  }
  func.func @transform_2(%arg0: i32) -> (i32, i32, i32) {
    %c0_i32 = arith.constant 0 : i32
    %c0_i32_0 = arith.constant 0 : i32
    %c0_i32_1 = arith.constant 0 : i32
    %c0_i32_2 = arith.constant 0 : i32
    return %c0_i32, %c0_i32_0, %c0_i32_1 : i32, i32, i32
  }
  func.func @transform_3(%arg0: i32) -> (i32, i32) {
    %c0_i32 = arith.constant 0 : i32
    %c0_i32_0 = arith.constant 0 : i32
    %c0_i32_1 = arith.constant 0 : i32
    return %c0_i32, %c0_i32_0 : i32, i32
  }
  func.func @transform_4(%arg0: i32) -> (i32, i32) {
    %c0_i32 = arith.constant 0 : i32
    %c0_i32_0 = arith.constant 0 : i32
    %c0_i32_1 = arith.constant 0 : i32
    return %c0_i32, %c0_i32_0 : i32, i32
  }
  func.func @transform_5(%arg0: i32) -> (i32, i32) {
    %c0_i32 = arith.constant 0 : i32
    %c0_i32_0 = arith.constant 0 : i32
    %c0_i32_1 = arith.constant 0 : i32
    return %c0_i32, %c0_i32_0 : i32, i32
  }
  func.func @transform_6(%arg0: i32) -> (i32, i32) {
    %c0_i32 = arith.constant 0 : i32
    %c0_i32_0 = arith.constant 0 : i32
    return %arg0, %c0_i32 : i32, i32
  }
}

</mosaic_0001>

<llo_original>
// kernel: tpu_custom_call.1
$region0: #{tpu_custom_call.1}
  #allocation0 [shape = 'u32[]', space=smem, size = 0x4, offset = 0x4, fixed_abs, tag = 'smem constant byte address 0x4 - core index']
  #allocation1 [shape = 'u32[144,128]{1,0:T(1,128)}', space=vmem, size = 0x12000, scoped, tag = 'internal scratch']
  %s0 = inlined_call_operand.vmem [shape: f32[8,4], index: 0, kind: input, shape index: {}]
  %s1 = inlined_call_operand.vmem [shape: bf16[4,128], index: 1, kind: input, shape index: {}]
  %s2 = inlined_call_operand.hbm [shape: bf16[2,128,128], index: 2, kind: input, shape index: {}]
  %s3 = inlined_call_operand.hbm [shape: bf16[128,128], index: 3, kind: input, shape index: {}]
  %s4 = inlined_call_operand.vmem [shape: f32[3,128], index: 4, kind: input, shape index: {}]
  %s5 = inlined_call_operand.vmem [shape: f32[1,128], index: 5, kind: input, shape index: {}]
  %s6 = inlined_call_operand.hbm [shape: f32[8,128], index: 6, kind: output, shape index: {}]
  %s7 = sld [smem:[#allocation0]]
  $region42: #{tpu_custom_call.1} parent=0
    _
  %s9 = ssub.s32 1, %s7
  %s10 = scalar_select 0, %s9, %s7
  $region1: #{tpu_custom_call.1} parent=0
    #allocation2 [shape = 'u8[65536]{0}', space=vmem, size = 0x10000, scoped, tag = 'input window, operand 2, single buffered']
    #allocation3 [shape = 's32[1]{0}', space=sflag, size = 0x4, scoped, tag = 'scoped memory for tpu_custom_call.1']
    #allocation4 [shape = 's32[1]{0}', space=sflag, size = 0x4, scoped, tag = 'scoped memory for tpu_custom_call.1']
    #allocation5 [shape = 'u8[32768]{0}', space=vmem, size = 0x8000, scoped, tag = 'input window, operand 3, single buffered']
    #allocation6 [shape = 's32[1]{0}', space=sflag, size = 0x4, scoped, tag = 'scoped memory for tpu_custom_call.1']
    #allocation7 [shape = 'u8[4096]{0}', space=vmem, size = 0x1000, scoped, tag = 'output window, operand 0, single buffered']
    %11 = vsyncpa [#allocation3], 0
    %12 = vsyncpa [#allocation6], 0
    %13 = vsyncpa [#allocation4], 0
    // Predicated region
    $region2: #{tpu_custom_call.1} parent=1 // pred_check
      _
    $region3: #{tpu_custom_call.1} parent=1 // pred_check_branch
      %15 = sbr.rel (0) target = $region5
    $region4: #{tpu_custom_call.1} parent=1 // pred_region
      _
    $region5: #{tpu_custom_call.1} parent=1 // pred_fallthru
      _
    // Predicated region
    $region6: #{tpu_custom_call.1} parent=1 // pred_check
      _
    $region7: #{tpu_custom_call.1} parent=1 // pred_check_branch
      %17 = sbr.rel (0) target = $region9
    $region8: #{tpu_custom_call.1} parent=1 // pred_region
      _
    $region9: #{tpu_custom_call.1} parent=1 // pred_fallthru
      _
    // Predicated region
    $region10: #{tpu_custom_call.1} parent=1 // pred_check
      _
    $region11: #{tpu_custom_call.1} parent=1 // pred_check_branch
      %19 = sbr.rel (0) target = $region13
    $region12: #{tpu_custom_call.1} parent=1 // pred_region
      %s21 = ssub.s32 2048, 2048
      %22 = vsyncadd [#allocation3], %s21
      %s23 = sshll.u32 [#allocation2], 4
      %s24 = int_to_ptr.vmem [resolvable:$true] %s23
      %29 = dma.hbm_to_vmem [thread:$0]  %s2, 2048, %s24, [#allocation3], 64, 64, 4
    $region13: #{tpu_custom_call.1} parent=1 // pred_fallthru
      _
    // Predicated region
    $region14: #{tpu_custom_call.1} parent=1 // pred_check
      _
    $region15: #{tpu_custom_call.1} parent=1 // pred_check_branch
      %31 = sbr.rel (0) target = $region17
    $region16: #{tpu_custom_call.1} parent=1 // pred_region
      %s33 = ssub.s32 1024, 1024
      %34 = vsyncadd [#allocation6], %s33
      %s35 = sshll.u32 [#allocation5], 4
      %s36 = int_to_ptr.vmem [resolvable:$true] %s35
      %41 = dma.hbm_to_vmem [thread:$0]  %s3, 1024, %s36, [#allocation6], 64, 64, 4
    $region17: #{tpu_custom_call.1} parent=1 // pred_fallthru
      _
    // Predicated region
    $region18: #{tpu_custom_call.1} parent=1 // pred_check
      _
    $region19: #{tpu_custom_call.1} parent=1 // pred_check_branch
      %43 = sbr.rel (0) target = $region21
    $region20: #{tpu_custom_call.1} parent=1 // pred_region
      _
    $region21: #{tpu_custom_call.1} parent=1 // pred_fallthru
      _
    // Predicated region
    $region22: #{tpu_custom_call.1} parent=1 // pred_check
      _
    $region23: #{tpu_custom_call.1} parent=1 // pred_check_branch
      %45 = sbr.rel (0) target = $region25
    $region24: #{tpu_custom_call.1} parent=1 // pred_region
      _
    $region25: #{tpu_custom_call.1} parent=1 // pred_fallthru
      _
    // Predicated region
    $region26: #{tpu_custom_call.1} parent=1 // pred_check
      _
    $region27: #{tpu_custom_call.1} parent=1 // pred_check_branch
      %47 = sbr.rel (0) target = $region29
    $region28: #{tpu_custom_call.1} parent=1 // pred_region
      %48 = dma.done [#allocation3], 2048
    $region29: #{tpu_custom_call.1} parent=1 // pred_fallthru
      _
    // Predicated region
    $region30: #{tpu_custom_call.1} parent=1 // pred_check
      _
    $region31: #{tpu_custom_call.1} parent=1 // pred_check_branch
      %50 = sbr.rel (0) target = $region33
    $region32: #{tpu_custom_call.1} parent=1 // pred_region
      %51 = dma.done [#allocation6], 1024
    $region33: #{tpu_custom_call.1} parent=1 // pred_fallthru
      _
    %v53 = vld [vmem:[%s0] sm:$0xff]
    %v54 = vpack.c.bf16 %v53, %v53
    %v55 = vld [vmem:[%s1] sm:$0x3]
    %v56 = vld [vmem:[%s4] sm:$0x1]
    %v57 = vlaneseq
    %v58 = vshrl.u32 %v57, 7
    %v59 = vsub.s32 0, %v58
    %v60 = vrot.slane %v56, %v59
    %vm61 = vcmask 31744
    %v63 = vsel %vm61, %v54, 0
    %vm65 = vcmask 1041408
    %v67 = vsel %vm65, %v55, 0
    %69 = vmatprep.subr.bf16.mxu0 0
    %70 = vmatpush1.bf16.msra.mxu0 %v67
    %71 = vmatprep.subr.bf16.mxu0 0
    %72 = vmatpush1.bf16.msra.mxu0 0
    %73 = vmatprep.subr.bf16.mxu0 0
    %74 = vmatpush1.bf16.msra.mxu0 0
    %75 = vmatprep.subr.bf16.mxu0 0
    %76 = vmatpush1.bf16.msra.mxu0 0
    %77 = vmatprep.subr.bf16.mxu0 0
    %78 = vmatpush1.bf16.msra.mxu0 0
    %79 = vmatprep.subr.bf16.mxu0 0
    %80 = vmatpush1.bf16.msra.mxu0 0
    %81 = vmatprep.subr.bf16.mxu0 0
    %82 = vmatpush1.bf16.msra.mxu0 0
    %83 = vmatprep.subr.bf16.mxu0 0
    %84 = vmatpush1.bf16.msra.mxu0 0
    %85 = vmatprep.subr.bf16.mxu0 0
    %86 = vmatpush1.bf16.msra.mxu0 0
    %87 = vmatprep.subr.bf16.mxu0 0
    %88 = vmatpush1.bf16.msra.mxu0 0
    %89 = vmatprep.subr.bf16.mxu0 0
    %90 = vmatpush1.bf16.msra.mxu0 0
    %91 = vmatprep.subr.bf16.mxu0 0
    %92 = vmatpush1.bf16.msra.mxu0 0
    %93 = vmatprep.subr.bf16.mxu0 0
    %94 = vmatpush1.bf16.msra.mxu0 0
    %95 = vmatprep.subr.bf16.mxu0 0
    %96 = vmatpush1.bf16.msra.mxu0 0
    %97 = vmatprep.subr.bf16.mxu0 0
    %98 = vmatpush1.bf16.msra.mxu0 0
    %99 = vmatprep.subr.bf16.mxu0 0
    %100 = vmatpush1.bf16.msra.mxu0 0
    %101 = vmatprep.mubr.bf16.mxu0 0
    %102 = vmatmul.mubr.bf16.gmra.mrb[0].mxu0 %v63
    %v103 = vpop.f32.mrb[0].mxu0
    %v104 = vadd.f32 %v60, %v103
    %v105 = vpop.f32.mrb[0].mxu0
    %v106 = vpop.f32.mrb[0].mxu0
    %v107 = vpop.f32.mrb[0].mxu0
    %108 = vdwg.mxu0
    %v109 = vmul.f32 %v104, 0.2
    %v110 = vmax.f32 %v104, %v109
    %v111 = vpack.c.bf16 %v110, %v110
    %v112 = vld [vmem:[#allocation2] sm:$0xf]
    %v113 = vld [vmem:[#allocation2 + $0x4] sm:$0xf]
    %v114 = vld [vmem:[#allocation2 + $0x8] sm:$0xf]
    %v115 = vld [vmem:[#allocation2 + $0xc] sm:$0xf]
    %v116 = vld [vmem:[#allocation2 + $0x10] sm:$0xf]
    %v117 = vld [vmem:[#allocation2 + $0x14] sm:$0xf]
    %v118 = vld [vmem:[#allocation2 + $0x18] sm:$0xf]
    %v119 = vld [vmem:[#allocation2 + $0x1c] sm:$0xf]
    %v120 = vld [vmem:[#allocation2 + $0x20] sm:$0xf]
    %v121 = vld [vmem:[#allocation2 + $0x24] sm:$0xf]
    %v122 = vld [vmem:[#allocation2 + $0x28] sm:$0xf]
    %v123 = vld [vmem:[#allocation2 + $0x2c] sm:$0xf]
    %v124 = vld [vmem:[#allocation2 + $0x30] sm:$0xf]
    %v125 = vld [vmem:[#allocation2 + $0x34] sm:$0xf]
    %v126 = vld [vmem:[#allocation2 + $0x38] sm:$0xf]
    %v127 = vld [vmem:[#allocation2 + $0x3c] sm:$0xf]
    %v128 = vld [vmem:[%s4 + $0x1] sm:$0x1]
    %v129 = vlaneseq
    %v130 = vshrl.u32 %v129, 7
    %v131 = vsub.s32 0, %v130
    %v132 = vrot.slane %v128, %v131
    %v149 = vunpack.c.l.b16 %v112
    %v150 = vunpack.c.l.b16 %v113
    %v151 = vunpack.c.l.b16 %v114
    %v152 = vunpack.c.l.b16 %v115
    %v153 = vunpack.c.l.b16 %v116
    %v154 = vunpack.c.l.b16 %v117
    %v155 = vunpack.c.l.b16 %v118
    %v156 = vunpack.c.l.b16 %v119
    %v157 = vunpack.c.l.b16 %v120
    %v158 = vunpack.c.l.b16 %v121
    %v159 = vunpack.c.l.b16 %v122
    %v160 = vunpack.c.l.b16 %v123
    %v161 = vunpack.c.l.b16 %v124
    %v162 = vunpack.c.l.b16 %v125
    %v163 = vunpack.c.l.b16 %v126
    %v164 = vunpack.c.l.b16 %v127
    %v165 = vpack.c.b16 %v150, %v149
    %v166 = vpack.c.b16 %v152, %v151
    %v167 = vpack.c.b16 %v154, %v153
    %v168 = vpack.c.b16 %v156, %v155
    %v169 = vpack.c.b16 %v158, %v157
    %v170 = vpack.c.b16 %v160, %v159
    %v171 = vpack.c.b16 %v162, %v161
    %v172 = vpack.c.b16 %v164, %v163
    %181 = vmatprep.subr.bf16.mxu0 0
    %182 = vmatpush1.bf16.msra.mxu0 %v165
    %183 = vmatprep.subr.bf16.mxu0 0
    %184 = vmatpush1.bf16.msra.mxu0 %v166
    %185 = vmatprep.subr.bf16.mxu0 0
    %186 = vmatpush1.bf16.msra.mxu0 %v167
    %187 = vmatprep.subr.bf16.mxu0 0
    %188 = vmatpush1.bf16.msra.mxu0 %v168
    %189 = vmatprep.subr.bf16.mxu0 0
    %190 = vmatpush1.bf16.msra.mxu0 %v169
    %191 = vmatprep.subr.bf16.mxu0 0
    %192 = vmatpush1.bf16.msra.mxu0 %v170
    %193 = vmatprep.subr.bf16.mxu0 0
    %194 = vmatpush1.bf16.msra.mxu0 %v171
    %195 = vmatprep.subr.bf16.mxu0 0
    %196 = vmatpush1.bf16.msra.mxu0 %v172
    %197 = vmatprep.subr.bf16.mxu0 0
    %198 = vmatpush1.bf16.msra.mxu0 0
    %199 = vmatprep.subr.bf16.mxu0 0
    %200 = vmatpush1.bf16.msra.mxu0 0
    %201 = vmatprep.subr.bf16.mxu0 0
    %202 = vmatpush1.bf16.msra.mxu0 0
    %203 = vmatprep.subr.bf16.mxu0 0
    %204 = vmatpush1.bf16.msra.mxu0 0
    %205 = vmatprep.subr.bf16.mxu0 0
    %206 = vmatpush1.bf16.msra.mxu0 0
    %207 = vmatprep.subr.bf16.mxu0 0
    %208 = vmatpush1.bf16.msra.mxu0 0
    %209 = vmatprep.subr.bf16.mxu0 0
    %210 = vmatpush1.bf16.msra.mxu0 0
    %211 = vmatprep.subr.bf16.mxu0 0
    %212 = vmatpush1.bf16.msra.mxu0 0
    %213 = vmatprep.mubr.bf16.mxu0 0
    %214 = vmatmul.mubr.bf16.gmra.mrb[0].mxu0 %v111
    %v215 = vpop.f32.mrb[0].mxu0
    %v216 = vadd.f32 %v132, %v215
    %v217 = vpop.f32.mrb[0].mxu0
    %v218 = vpop.f32.mrb[0].mxu0
    %v219 = vpop.f32.mrb[0].mxu0
    %220 = vdwg.mxu0
    %v221 = vmul.f32 %v216, 0.2
    %v222 = vmax.f32 %v216, %v221
    %v223 = vpack.c.bf16 %v222, %v222
    %s224 = scalar_lea.vmem [#allocation2], 64
    %v225 = vld [vmem:[%s224] sm:$0xf]
    %v226 = vld [vmem:[%s224 + $0x4] sm:$0xf]
    %v227 = vld [vmem:[%s224 + $0x8] sm:$0xf]
    %v228 = vld [vmem:[%s224 + $0xc] sm:$0xf]
    %v229 = vld [vmem:[%s224 + $0x10] sm:$0xf]
    %v230 = vld [vmem:[%s224 + $0x14] sm:$0xf]
    %v231 = vld [vmem:[%s224 + $0x18] sm:$0xf]
    %v232 = vld [vmem:[%s224 + $0x1c] sm:$0xf]
    %v233 = vld [vmem:[%s224 + $0x20] sm:$0xf]
    %v234 = vld [vmem:[%s224 + $0x24] sm:$0xf]
    %v235 = vld [vmem:[%s224 + $0x28] sm:$0xf]
    %v236 = vld [vmem:[%s224 + $0x2c] sm:$0xf]
    %v237 = vld [vmem:[%s224 + $0x30] sm:$0xf]
    %v238 = vld [vmem:[%s224 + $0x34] sm:$0xf]
    %v239 = vld [vmem:[%s224 + $0x38] sm:$0xf]
    %v240 = vld [vmem:[%s224 + $0x3c] sm:$0xf]
    %v241 = vld [vmem:[%s4 + $0x2] sm:$0x1]
    %v242 = vlaneseq
    %v243 = vshrl.u32 %v242, 7
    %v244 = vsub.s32 0, %v243
    %v245 = vrot.slane %v241, %v244
    %v262 = vunpack.c.l.b16 %v225
    %v263 = vunpack.c.l.b16 %v226
    %v264 = vunpack.c.l.b16 %v227
    %v265 = vunpack.c.l.b16 %v228
    %v266 = vunpack.c.l.b16 %v229
    %v267 = vunpack.c.l.b16 %v230
    %v268 = vunpack.c.l.b16 %v231
    %v269 = vunpack.c.l.b16 %v232
    %v270 = vunpack.c.l.b16 %v233
    %v271 = vunpack.c.l.b16 %v234
    %v272 = vunpack.c.l.b16 %v235
    %v273 = vunpack.c.l.b16 %v236
    %v274 = vunpack.c.l.b16 %v237
    %v275 = vunpack.c.l.b16 %v238
    %v276 = vunpack.c.l.b16 %v239
    %v277 = vunpack.c.l.b16 %v240
    %v278 = vpack.c.b16 %v263, %v262
    %v279 = vpack.c.b16 %v265, %v264
    %v280 = vpack.c.b16 %v267, %v266
    %v281 = vpack.c.b16 %v269, %v268
    %v282 = vpack.c.b16 %v271, %v270
    %v283 = vpack.c.b16 %v273, %v272
    %v284 = vpack.c.b16 %v275, %v274
    %v285 = vpack.c.b16 %v277, %v276
    %294 = vmatprep.subr.bf16.mxu0 0
    %295 = vmatpush1.bf16.msra.mxu0 %v278
    %296 = vmatprep.subr.bf16.mxu0 0
    %297 = vmatpush1.bf16.msra.mxu0 %v279
    %298 = vmatprep.subr.bf16.mxu0 0
    %299 = vmatpush1.bf16.msra.mxu0 %v280
    %300 = vmatprep.subr.bf16.mxu0 0
    %301 = vmatpush1.bf16.msra.mxu0 %v281
    %302 = vmatprep.subr.bf16.mxu0 0
    %303 = vmatpush1.bf16.msra.mxu0 %v282
    %304 = vmatprep.subr.bf16.mxu0 0
    %305 = vmatpush1.bf16.msra.mxu0 %v283
    %306 = vmatprep.subr.bf16.mxu0 0
    %307 = vmatpush1.bf16.msra.mxu0 %v284
    %308 = vmatprep.subr.bf16.mxu0 0
    %309 = vmatpush1.bf16.msra.mxu0 %v285
    %310 = vmatprep.subr.bf16.mxu0 0
    %311 = vmatpush1.bf16.msra.mxu0 0
    %312 = vmatprep.subr.bf16.mxu0 0
    %313 = vmatpush1.bf16.msra.mxu0 0
    %314 = vmatprep.subr.bf16.mxu0 0
    %315 = vmatpush1.bf16.msra.mxu0 0
    %316 = vmatprep.subr.bf16.mxu0 0
    %317 = vmatpush1.bf16.msra.mxu0 0
    %318 = vmatprep.subr.bf16.mxu0 0
    %319 = vmatpush1.bf16.msra.mxu0 0
    %320 = vmatprep.subr.bf16.mxu0 0
    %321 = vmatpush1.bf16.msra.mxu0 0
    %322 = vmatprep.subr.bf16.mxu0 0
    %323 = vmatpush1.bf16.msra.mxu0 0
    %324 = vmatprep.subr.bf16.mxu0 0
    %325 = vmatpush1.bf16.msra.mxu0 0
    %326 = vmatprep.mubr.bf16.mxu0 0
    %327 = vmatmul.mubr.bf16.gmra.mrb[0].mxu0 %v223
    %v328 = vpop.f32.mrb[0].mxu0
    %v329 = vadd.f32 %v245, %v328
    %v330 = vpop.f32.mrb[0].mxu0
    %v331 = vpop.f32.mrb[0].mxu0
    %v332 = vpop.f32.mrb[0].mxu0
    %333 = vdwg.mxu0
    %v334 = vmul.f32 %v329, 0.2
    %v335 = vmax.f32 %v329, %v334
    %v336 = vpack.c.bf16 %v335, %v335
    %v337 = vld [vmem:[#allocation5] sm:$0xf]
    %v338 = vld [vmem:[#allocation5 + $0x4] sm:$0xf]
    %v339 = vld [vmem:[#allocation5 + $0x8] sm:$0xf]
    %v340 = vld [vmem:[#allocation5 + $0xc] sm:$0xf]
    %v341 = vld [vmem:[#allocation5 + $0x10] sm:$0xf]
    %v342 = vld [vmem:[#allocation5 + $0x14] sm:$0xf]
    %v343 = vld [vmem:[#allocation5 + $0x18] sm:$0xf]
    %v344 = vld [vmem:[#allocation5 + $0x1c] sm:$0xf]
    %v345 = vld [vmem:[#allocation5 + $0x20] sm:$0xf]
    %v346 = vld [vmem:[#allocation5 + $0x24] sm:$0xf]
    %v347 = vld [vmem:[#allocation5 + $0x28] sm:$0xf]
    %v348 = vld [vmem:[#allocation5 + $0x2c] sm:$0xf]
    %v349 = vld [vmem:[#allocation5 + $0x30] sm:$0xf]
    %v350 = vld [vmem:[#allocation5 + $0x34] sm:$0xf]
    %v351 = vld [vmem:[#allocation5 + $0x38] sm:$0xf]
    %v352 = vld [vmem:[#allocation5 + $0x3c] sm:$0xf]
    %v353 = vld [vmem:[%s5] sm:$0x1]
    %v355 = vlaneseq
    %v356 = vshrl.u32 %v355, 7
    %v357 = vsub.s32 0, %v356
    %v358 = vrot.slane %v353, %v357
    %v376 = vunpack.c.l.b16 %v337
    %v377 = vunpack.c.l.b16 %v338
    %v378 = vunpack.c.l.b16 %v339
    %v379 = vunpack.c.l.b16 %v340
    %v380 = vunpack.c.l.b16 %v341
    %v381 = vunpack.c.l.b16 %v342
    %v382 = vunpack.c.l.b16 %v343
    %v383 = vunpack.c.l.b16 %v344
    %v384 = vunpack.c.l.b16 %v345
    %v385 = vunpack.c.l.b16 %v346
    %v386 = vunpack.c.l.b16 %v347
    %v387 = vunpack.c.l.b16 %v348
    %v388 = vunpack.c.l.b16 %v349
    %v389 = vunpack.c.l.b16 %v350
    %v390 = vunpack.c.l.b16 %v351
    %v391 = vunpack.c.l.b16 %v352
    %v392 = vpack.c.b16 %v377, %v376
    %v393 = vpack.c.b16 %v379, %v378
    %v394 = vpack.c.b16 %v381, %v380
    %v395 = vpack.c.b16 %v383, %v382
    %v396 = vpack.c.b16 %v385, %v384
    %v397 = vpack.c.b16 %v387, %v386
    %v398 = vpack.c.b16 %v389, %v388
    %v399 = vpack.c.b16 %v391, %v390
    %408 = vmatprep.subr.bf16.mxu0 0
    %409 = vmatpush1.bf16.msra.mxu0 %v392
    %410 = vmatprep.subr.bf16.mxu0 0
    %411 = vmatpush1.bf16.msra.mxu0 %v393
    %412 = vmatprep.subr.bf16.mxu0 0
    %413 = vmatpush1.bf16.msra.mxu0 %v394
    %414 = vmatprep.subr.bf16.mxu0 0
    %415 = vmatpush1.bf16.msra.mxu0 %v395
    %416 = vmatprep.subr.bf16.mxu0 0
    %417 = vmatpush1.bf16.msra.mxu0 %v396
    %418 = vmatprep.subr.bf16.mxu0 0
    %419 = vmatpush1.bf16.msra.mxu0 %v397
    %420 = vmatprep.subr.bf16.mxu0 0
    %421 = vmatpush1.bf16.msra.mxu0 %v398
    %422 = vmatprep.subr.bf16.mxu0 0
    %423 = vmatpush1.bf16.msra.mxu0 %v399
    %424 = vmatprep.subr.bf16.mxu0 0
    %425 = vmatpush1.bf16.msra.mxu0 0
    %426 = vmatprep.subr.bf16.mxu0 0
    %427 = vmatpush1.bf16.msra.mxu0 0
    %428 = vmatprep.subr.bf16.mxu0 0
    %429 = vmatpush1.bf16.msra.mxu0 0
    %430 = vmatprep.subr.bf16.mxu0 0
    %431 = vmatpush1.bf16.msra.mxu0 0
    %432 = vmatprep.subr.bf16.mxu0 0
    %433 = vmatpush1.bf16.msra.mxu0 0
    %434 = vmatprep.subr.bf16.mxu0 0
    %435 = vmatpush1.bf16.msra.mxu0 0
    %436 = vmatprep.subr.bf16.mxu0 0
    %437 = vmatpush1.bf16.msra.mxu0 0
    %438 = vmatprep.subr.bf16.mxu0 0
    %439 = vmatpush1.bf16.msra.mxu0 0
    %440 = vmatprep.mubr.bf16.mxu0 0
    %441 = vmatmul.mubr.bf16.gmra.mrb[0].mxu0 %v336
    %v442 = vpop.f32.mrb[0].mxu0
    %v443 = vadd.f32 %v358, %v442
    %v444 = vpop.f32.mrb[0].mxu0
    %v445 = vpop.f32.mrb[0].mxu0
    %v446 = vpop.f32.mrb[0].mxu0
    %447 = vdwg.mxu0
    %448 = vst [vmem:[#allocation7] sm:$0xff] %v443
    // Predicated region
    $region34: #{tpu_custom_call.1} parent=1 // pred_check
      _
    $region35: #{tpu_custom_call.1} parent=1 // pred_check_branch
      %450 = sbr.rel (0) target = $region37
    $region36: #{tpu_custom_call.1} parent=1 // pred_region
      %s452 = ssub.s32 128, 128
      %453 = vsyncadd [#allocation4], %s452
      %s455 = sshll.u32 [#allocation7], 4
      %s456 = int_to_ptr.vmem [resolvable:$true] %s455
      %458 = dma.vmem_to_hbm [thread:$0]  %s456, 128, %s6, [#allocation4]
    $region37: #{tpu_custom_call.1} parent=1 // pred_fallthru
      _
    // Predicated region
    $region38: #{tpu_custom_call.1} parent=1 // pred_check
      _
    $region39: #{tpu_custom_call.1} parent=1 // pred_check_branch
      %460 = sbr.rel (0) target = $region41
    $region40: #{tpu_custom_call.1} parent=1 // pred_region
      %461 = dma.done [#allocation4], 128
    $region41: #{tpu_custom_call.1} parent=1 // pred_fallthru
      _
    %462 = vsyncpa [#allocation3], 1
    %463 = vsyncpa [#allocation6], 1
    %464 = vsyncpa [#allocation4], 1

// kernel: tpu_custom_call.1
$region0: #{tpu_custom_call.1}
  #allocation0 [shape = 'u32[]', space=smem, size = 0x4, offset = 0x4, fixed_abs, tag = 'smem constant byte address 0x4 - core index']
  #allocation1 [shape = 'u32[144,128]{1,0:T(1,128)}', space=vmem, size = 0x12000, scoped, tag = 'internal scratch']
  %s0 = inlined_call_operand.vmem [shape: f32[8,4], index: 0, kind: input, shape index: {}]
  %s1 = inlined_call_operand.vmem [shape: bf16[4,128], index: 1, kind: input, shape index: {}]
  %s2 = inlined_call_operand.hbm [shape: bf16[2,128,128], index: 2, kind: input, shape index: {}]
  %s3 = inlined_call_operand.hbm [shape: bf16[128,128], index: 3, kind: input, shape index: {}]
  %s4 = inlined_call_operand.vmem [shape: f32[3,128], index: 4, kind: input, shape index: {}]
  %s5 = inlined_call_operand.vmem [shape: f32[1,128], index: 5, kind: input, shape index: {}]
  %s6 = inlined_call_operand.hbm [shape: f32[8,128], index: 6, kind: output, shape index: {}]
  %s7 = sld [smem:[#allocation0]]
  $region42: #{tpu_custom_call.1} parent=0
    _
  %s9 = ssub.s32 1, %s7
  %s10 = scalar_select 0, %s9, %s7
  $region1: #{tpu_custom_call.1} parent=0
    #allocation2 [shape = 'u8[65536]{0}', space=vmem, size = 0x10000, scoped, tag = 'input window, operand 2, single buffered']
    #allocation3 [shape = 's32[1]{0}', space=sflag, size = 0x4, scoped, tag = 'scoped memory for tpu_custom_call.1']
    #allocation4 [shape = 's32[1]{0}', space=sflag, size = 0x4, scoped, tag = 'scoped memory for tpu_custom_call.1']
    #allocation5 [shape = 'u8[32768]{0}', space=vmem, size = 0x8000, scoped, tag = 'input window, operand 3, single buffered']
    #allocation6 [shape = 's32[1]{0}', space=sflag, size = 0x4, scoped, tag = 'scoped memory for tpu_custom_call.1']
    #allocation7 [shape = 'u8[4096]{0}', space=vmem, size = 0x1000, scoped, tag = 'output window, operand 0, single buffered']
    %11 = vsyncpa [#allocation3], 0
    %12 = vsyncpa [#allocation6], 0
    %13 = vsyncpa [#allocation4], 0
    // Predicated region
    $region2: #{tpu_custom_call.1} parent=1 // pred_check
      _
    $region3: #{tpu_custom_call.1} parent=1 // pred_check_branch
      %15 = sbr.rel (0) target = $region5
    $region4: #{tpu_custom_call.1} parent=1 // pred_region
      _
    $region5: #{tpu_custom_call.1} parent=1 // pred_fallthru
      _
    // Predicated region
    $region6: #{tpu_custom_call.1} parent=1 // pred_check
      _
    $region7: #{tpu_custom_call.1} parent=1 // pred_check_branch
      %17 = sbr.rel (0) target = $region9
    $region8: #{tpu_custom_call.1} parent=1 // pred_region
      _
    $region9: #{tpu_custom_call.1} parent=1 // pred_fallthru
      _
    // Predicated region
    $region10: #{tpu_custom_call.1} parent=1 // pred_check
      _
    $region11: #{tpu_custom_call.1} parent=1 // pred_check_branch
      %19 = sbr.rel (0) target = $region13
    $region12: #{tpu_custom_call.1} parent=1 // pred_region
      %s21 = ssub.s32 2048, 2048
      %22 = vsyncadd [#allocation3], %s21
      %s23 = sshll.u32 [#allocation2], 4
      %s24 = int_to_ptr.vmem [resolvable:$true] %s23
      %29 = dma.hbm_to_vmem [thread:$0]  %s2, 2048, %s24, [#allocation3], 64, 64, 4
    $region13: #{tpu_custom_call.1} parent=1 // pred_fallthru
      _
    // Predicated region
    $region14: #{tpu_custom_call.1} parent=1 // pred_check
      _
    $region15: #{tpu_custom_call.1} parent=1 // pred_check_branch
      %31 = sbr.rel (0) target = $region17
    $region16: #{tpu_custom_call.1} parent=1 // pred_region
      %s33 = ssub.s32 1024, 1024
      %34 = vsyncadd [#allocation6], %s33
      %s35 = sshll.u32 [#allocation5], 4
      %s36 = int_to_ptr.vmem [resolvable:$true] %s35
      %41 = dma.hbm_to_vmem [thread:$0]  %s3, 1024, %s36, [#allocation6], 64, 64, 4
    $region17: #{tpu_custom_call.1} parent=1 // pred_fallthru
      _
    // Predicated region
    $region18: #{tpu_custom_call.1} parent=1 // pred_check
      _
    $region19: #{tpu_custom_call.1} parent=1 // pred_check_branch
      %43 = sbr.rel (0) target = $region21
    $region20: #{tpu_custom_call.1} parent=1 // pred_region
      _
    $region21: #{tpu_custom_call.1} parent=1 // pred_fallthru
      _
    // Predicated region
    $region22: #{tpu_custom_call.1} parent=1 // pred_check
      _
    $region23: #{tpu_custom_call.1} parent=1 // pred_check_branch
      %45 = sbr.rel (0) target = $region25
    $region24: #{tpu_custom_call.1} parent=1 // pred_region
      _
    $region25: #{tpu_custom_call.1} parent=1 // pred_fallthru
      _
    // Predicated region
    $region26: #{tpu_custom_call.1} parent=1 // pred_check
      _
    $region27: #{tpu_custom_call.1} parent=1 // pred_check_branch
      %47 = sbr.rel (0) target = $region29
    $region28: #{tpu_custom_call.1} parent=1 // pred_region
      %48 = dma.done [#allocation3], 2048
    $region29: #{tpu_custom_call.1} parent=1 // pred_fallthru
      _
    // Predicated region
    $region30: #{tpu_custom_call.1} parent=1 // pred_check
      _
    $region31: #{tpu_custom_call.1} parent=1 // pred_check_branch
      %50 = sbr.rel (0) target = $region33
    $region32: #{tpu_custom_call.1} parent=1 // pred_region
      %51 = dma.done [#allocation6], 1024
    $region33: #{tpu_custom_call.1} parent=1 // pred_fallthru
      _
    %v53 = vld [vmem:[%s0] sm:$0xff]
    %v54 = vpack.c.bf16 %v53, %v53
    %v55 = vld [vmem:[%s1] sm:$0x3]
    %v56 = vld [vmem:[%s4] sm:$0x1]
    %v57 = vlaneseq
    %v58 = vshrl.u32 %v57, 7
    %v59 = vsub.s32 0, %v58
    %v60 = vrot.slane %v56, %v59
    %vm61 = vcmask 31744
    %v63 = vsel %vm61, %v54, 0
    %vm65 = vcmask 1041408
    %v67 = vsel %vm65, %v55, 0
    %69 = vmatprep.subr.bf16.mxu0 0
    %70 = vmatpush1.bf16.msra.mxu0 %v67
    %71 = vmatprep.subr.bf16.mxu0 0
    %72 = vmatpush1.bf16.msra.mxu0 0
    %73 = vmatprep.subr.bf16.mxu0 0
    %74 = vmatpush1.bf16.msra.mxu0 0
    %75 = vmatprep.subr.bf16.mxu0 0
    %76 = vmatpush1.bf16.msra.mxu0 0
    %77 = vmatprep.subr.bf16.mxu0 0
    %78 = vmatpush1.bf16.msra.mxu0 0
    %79 = vmatprep.subr.bf16.mxu0 0
    %80 = vmatpush1.bf16.msra.mxu0 0
    %81 = vmatprep.subr.bf16.mxu0 0
    %82 = vmatpush1.bf16.msra.mxu0 0
    %83 = vmatprep.subr.bf16.mxu0 0
    %84 = vmatpush1.bf16.msra.mxu0 0
    %85 = vmatprep.subr.bf16.mxu0 0
    %86 = vmatpush1.bf16.msra.mxu0 0
    %87 = vmatprep.subr.bf16.mxu0 0
    %88 = vmatpush1.bf16.msra.mxu0 0
    %89 = vmatprep.subr.bf16.mxu0 0
    %90 = vmatpush1.bf16.msra.mxu0 0
    %91 = vmatprep.subr.bf16.mxu0 0
    %92 = vmatpush1.bf16.msra.mxu0 0
    %93 = vmatprep.subr.bf16.mxu0 0
    %94 = vmatpush1.bf16.msra.mxu0 0
    %95 = vmatprep.subr.bf16.mxu0 0
    %96 = vmatpush1.bf16.msra.mxu0 0
    %97 = vmatprep.subr.bf16.mxu0 0
    %98 = vmatpush1.bf16.msra.mxu0 0
    %99 = vmatprep.subr.bf16.mxu0 0
    %100 = vmatpush1.bf16.msra.mxu0 0
    %101 = vmatprep.mubr.bf16.mxu0 0
    %102 = vmatmul.mubr.bf16.gmra.mrb[0].mxu0 %v63
    %v103 = vpop.f32.mrb[0].mxu0
    %v104 = vadd.f32 %v60, %v103
    %v105 = vpop.f32.mrb[0].mxu0
    %v106 = vpop.f32.mrb[0].mxu0
    %v107 = vpop.f32.mrb[0].mxu0
    %108 = vdwg.mxu0
    %v109 = vmul.f32 %v104, 0.2
    %v110 = vmax.f32 %v104, %v109
    %v111 = vpack.c.bf16 %v110, %v110
    %v112 = vld [vmem:[#allocation2] sm:$0xf]
    %v113 = vld [vmem:[#allocation2 + $0x4] sm:$0xf]
    %v114 = vld [vmem:[#allocation2 + $0x8] sm:$0xf]
    %v115 = vld [vmem:[#allocation2 + $0xc] sm:$0xf]
    %v116 = vld [vmem:[#allocation2 + $0x10] sm:$0xf]
    %v117 = vld [vmem:[#allocation2 + $0x14] sm:$0xf]
    %v118 = vld [vmem:[#allocation2 + $0x18] sm:$0xf]
    %v119 = vld [vmem:[#allocation2 + $0x1c] sm:$0xf]
    %v120 = vld [vmem:[#allocation2 + $0x20] sm:$0xf]
    %v121 = vld [vmem:[#allocation2 + $0x24] sm:$0xf]
    %v122 = vld [vmem:[#allocation2 + $0x28] sm:$0xf]
    %v123 = vld [vmem:[#allocation2 + $0x2c] sm:$0xf]
    %v124 = vld [vmem:[#allocation2 + $0x30] sm:$0xf]
    %v125 = vld [vmem:[#allocation2 + $0x34] sm:$0xf]
    %v126 = vld [vmem:[#allocation2 + $0x38] sm:$0xf]
    %v127 = vld [vmem:[#allocation2 + $0x3c] sm:$0xf]
    %v128 = vld [vmem:[%s4 + $0x1] sm:$0x1]
    %v129 = vlaneseq
    %v130 = vshrl.u32 %v129, 7
    %v131 = vsub.s32 0, %v130
    %v132 = vrot.slane %v128, %v131
    %v149 = vunpack.c.l.b16 %v112
    %v150 = vunpack.c.l.b16 %v113
    %v151 = vunpack.c.l.b16 %v114
    %v152 = vunpack.c.l.b16 %v115
    %v153 = vunpack.c.l.b16 %v116
    %v154 = vunpack.c.l.b16 %v117
    %v155 = vunpack.c.l.b16 %v118
    %v156 = vunpack.c.l.b16 %v119
    %v157 = vunpack.c.l.b16 %v120
    %v158 = vunpack.c.l.b16 %v121
    %v159 = vunpack.c.l.b16 %v122
    %v160 = vunpack.c.l.b16 %v123
    %v161 = vunpack.c.l.b16 %v124
    %v162 = vunpack.c.l.b16 %v125
    %v163 = vunpack.c.l.b16 %v126
    %v164 = vunpack.c.l.b16 %v127
    %v165 = vpack.c.b16 %v150, %v149
    %v166 = vpack.c.b16 %v152, %v151
    %v167 = vpack.c.b16 %v154, %v153
    %v168 = vpack.c.b16 %v156, %v155
    %v169 = vpack.c.b16 %v158, %v157
    %v170 = vpack.c.b16 %v160, %v159
    %v171 = vpack.c.b16 %v162, %v161
    %v172 = vpack.c.b16 %v164, %v163
    %181 = vmatprep.subr.bf16.mxu0 0
    %182 = vmatpush1.bf16.msra.mxu0 %v165
    %183 = vmatprep.subr.bf16.mxu0 0
    %184 = vmatpush1.bf16.msra.mxu0 %v166
    %185 = vmatprep.subr.bf16.mxu0 0
    %186 = vmatpush1.bf16.msra.mxu0 %v167
    %187 = vmatprep.subr.bf16.mxu0 0
    %188 = vmatpush1.bf16.msra.mxu0 %v168
    %189 = vmatprep.subr.bf16.mxu0 0
    %190 = vmatpush1.bf16.msra.mxu0 %v169
    %191 = vmatprep.subr.bf16.mxu0 0
    %192 = vmatpush1.bf16.msra.mxu0 %v170
    %193 = vmatprep.subr.bf16.mxu0 0
    %194 = vmatpush1.bf16.msra.mxu0 %v171
    %195 = vmatprep.subr.bf16.mxu0 0
    %196 = vmatpush1.bf16.msra.mxu0 %v172
    %197 = vmatprep.subr.bf16.mxu0 0
    %198 = vmatpush1.bf16.msra.mxu0 0
    %199 = vmatprep.subr.bf16.mxu0 0
    %200 = vmatpush1.bf16.msra.mxu0 0
    %201 = vmatprep.subr.bf16.mxu0 0
    %202 = vmatpush1.bf16.msra.mxu0 0
    %203 = vmatprep.subr.bf16.mxu0 0
    %204 = vmatpush1.bf16.msra.mxu0 0
    %205 = vmatprep.subr.bf16.mxu0 0
    %206 = vmatpush1.bf16.msra.mxu0 0
    %207 = vmatprep.subr.bf16.mxu0 0
    %208 = vmatpush1.bf16.msra.mxu0 0
    %209 = vmatprep.subr.bf16.mxu0 0
    %210 = vmatpush1.bf16.msra.mxu0 0
    %211 = vmatprep.subr.bf16.mxu0 0
    %212 = vmatpush1.bf16.msra.mxu0 0
    %213 = vmatprep.mubr.bf16.mxu0 0
    %214 = vmatmul.mubr.bf16.gmra.mrb[0].mxu0 %v111
    %v215 = vpop.f32.mrb[0].mxu0
    %v216 = vadd.f32 %v132, %v215
    %v217 = vpop.f32.mrb[0].mxu0
    %v218 = vpop.f32.mrb[0].mxu0
    %v219 = vpop.f32.mrb[0].mxu0
    %220 = vdwg.mxu0
    %v221 = vmul.f32 %v216, 0.2
    %v222 = vmax.f32 %v216, %v221
    %v223 = vpack.c.bf16 %v222, %v222
    %s224 = scalar_lea.vmem [#allocation2], 64
    %v225 = vld [vmem:[%s224] sm:$0xf]
    %v226 = vld [vmem:[%s224 + $0x4] sm:$0xf]
    %v227 = vld [vmem:[%s224 + $0x8] sm:$0xf]
    %v228 = vld [vmem:[%s224 + $0xc] sm:$0xf]
    %v229 = vld [vmem:[%s224 + $0x10] sm:$0xf]
    %v230 = vld [vmem:[%s224 + $0x14] sm:$0xf]
    %v231 = vld [vmem:[%s224 + $0x18] sm:$0xf]
    %v232 = vld [vmem:[%s224 + $0x1c] sm:$0xf]
    %v233 = vld [vmem:[%s224 + $0x20] sm:$0xf]
    %v234 = vld [vmem:[%s224 + $0x24] sm:$0xf]
    %v235 = vld [vmem:[%s224 + $0x28] sm:$0xf]
    %v236 = vld [vmem:[%s224 + $0x2c] sm:$0xf]
    %v237 = vld [vmem:[%s224 + $0x30] sm:$0xf]
    %v238 = vld [vmem:[%s224 + $0x34] sm:$0xf]
    %v239 = vld [vmem:[%s224 + $0x38] sm:$0xf]
    %v240 = vld [vmem:[%s224 + $0x3c] sm:$0xf]
    %v241 = vld [vmem:[%s4 + $0x2] sm:$0x1]
    %v242 = vlaneseq
    %v243 = vshrl.u32 %v242, 7
    %v244 = vsub.s32 0, %v243
    %v245 = vrot.slane %v241, %v244
    %v262 = vunpack.c.l.b16 %v225
    %v263 = vunpack.c.l.b16 %v226
    %v264 = vunpack.c.l.b16 %v227
    %v265 = vunpack.c.l.b16 %v228
    %v266 = vunpack.c.l.b16 %v229
    %v267 = vunpack.c.l.b16 %v230
    %v268 = vunpack.c.l.b16 %v231
    %v269 = vunpack.c.l.b16 %v232
    %v270 = vunpack.c.l.b16 %v233
    %v271 = vunpack.c.l.b16 %v234
    %v272 = vunpack.c.l.b16 %v235
    %v273 = vunpack.c.l.b16 %v236
    %v274 = vunpack.c.l.b16 %v237
    %v275 = vunpack.c.l.b16 %v238
    %v276 = vunpack.c.l.b16 %v239
    %v277 = vunpack.c.l.b16 %v240
    %v278 = vpack.c.b16 %v263, %v262
    %v279 = vpack.c.b16 %v265, %v264
    %v280 = vpack.c.b16 %v267, %v266
    %v281 = vpack.c.b16 %v269, %v268
    %v282 = vpack.c.b16 %v271, %v270
    %v283 = vpack.c.b16 %v273, %v272
    %v284 = vpack.c.b16 %v275, %v274
    %v285 = vpack.c.b16 %v277, %v276
    %294 = vmatprep.subr.bf16.mxu0 0
    %295 = vmatpush1.bf16.msra.mxu0 %v278
    %296 = vmatprep.subr.bf16.mxu0 0
    %297 = vmatpush1.bf16.msra.mxu0 %v279
    %298 = vmatprep.subr.bf16.mxu0 0
    %299 = vmatpush1.bf16.msra.mxu0 %v280
    %300 = vmatprep.subr.bf16.mxu0 0
    %301 = vmatpush1.bf16.msra.mxu0 %v281
    %302 = vmatprep.subr.bf16.mxu0 0
    %303 = vmatpush1.bf16.msra.mxu0 %v282
    %304 = vmatprep.subr.bf16.mxu0 0
    %305 = vmatpush1.bf16.msra.mxu0 %v283
    %306 = vmatprep.subr.bf16.mxu0 0
    %307 = vmatpush1.bf16.msra.mxu0 %v284
    %308 = vmatprep.subr.bf16.mxu0 0
    %309 = vmatpush1.bf16.msra.mxu0 %v285
    %310 = vmatprep.subr.bf16.mxu0 0
    %311 = vmatpush1.bf16.msra.mxu0 0
    %312 = vmatprep.subr.bf16.mxu0 0
    %313 = vmatpush1.bf16.msra.mxu0 0
    %314 = vmatprep.subr.bf16.mxu0 0
    %315 = vmatpush1.bf16.msra.mxu0 0
    %316 = vmatprep.subr.bf16.mxu0 0
    %317 = vmatpush1.bf16.msra.mxu0 0
    %318 = vmatprep.subr.bf16.mxu0 0
    %319 = vmatpush1.bf16.msra.mxu0 0
    %320 = vmatprep.subr.bf16.mxu0 0
    %321 = vmatpush1.bf16.msra.mxu0 0
    %322 = vmatprep.subr.bf16.mxu0 0
    %323 = vmatpush1.bf16.msra.mxu0 0
    %324 = vmatprep.subr.bf16.mxu0 0
    %325 = vmatpush1.bf16.msra.mxu0 0
    %326 = vmatprep.mubr.bf16.mxu0 0
    %327 = vmatmul.mubr.bf16.gmra.mrb[0].mxu0 %v223
    %v328 = vpop.f32.mrb[0].mxu0
    %v329 = vadd.f32 %v245, %v328
    %v330 = vpop.f32.mrb[0].mxu0
    %v331 = vpop.f32.mrb[0].mxu0
    %v332 = vpop.f32.mrb[0].mxu0
    %333 = vdwg.mxu0
    %v334 = vmul.f32 %v329, 0.2
    %v335 = vmax.f32 %v329, %v334
    %v336 = vpack.c.bf16 %v335, %v335
    %v337 = vld [vmem:[#allocation5] sm:$0xf]
    %v338 = vld [vmem:[#allocation5 + $0x4] sm:$0xf]
    %v339 = vld [vmem:[#allocation5 + $0x8] sm:$0xf]
    %v340 = vld [vmem:[#allocation5 + $0xc] sm:$0xf]
    %v341 = vld [vmem:[#allocation5 + $0x10] sm:$0xf]
    %v342 = vld [vmem:[#allocation5 + $0x14] sm:$0xf]
    %v343 = vld [vmem:[#allocation5 + $0x18] sm:$0xf]
    %v344 = vld [vmem:[#allocation5 + $0x1c] sm:$0xf]
    %v345 = vld [vmem:[#allocation5 + $0x20] sm:$0xf]
    %v346 = vld [vmem:[#allocation5 + $0x24] sm:$0xf]
    %v347 = vld [vmem:[#allocation5 + $0x28] sm:$0xf]
    %v348 = vld [vmem:[#allocation5 + $0x2c] sm:$0xf]
    %v349 = vld [vmem:[#allocation5 + $0x30] sm:$0xf]
    %v350 = vld [vmem:[#allocation5 + $0x34] sm:$0xf]
    %v351 = vld [vmem:[#allocation5 + $0x38] sm:$0xf]
    %v352 = vld [vmem:[#allocation5 + $0x3c] sm:$0xf]
    %v353 = vld [vmem:[%s5] sm:$0x1]
    %v355 = vlaneseq
    %v356 = vshrl.u32 %v355, 7
    %v357 = vsub.s32 0, %v356
    %v358 = vrot.slane %v353, %v357
    %v376 = vunpack.c.l.b16 %v337
    %v377 = vunpack.c.l.b16 %v338
    %v378 = vunpack.c.l.b16 %v339
    %v379 = vunpack.c.l.b16 %v340
    %v380 = vunpack.c.l.b16 %v341
    %v381 = vunpack.c.l.b16 %v342
    %v382 = vunpack.c.l.b16 %v343
    %v383 = vunpack.c.l.b16 %v344
    %v384 = vunpack.c.l.b16 %v345
    %v385 = vunpack.c.l.b16 %v346
    %v386 = vunpack.c.l.b16 %v347
    %v387 = vunpack.c.l.b16 %v348
    %v388 = vunpack.c.l.b16 %v349
    %v389 = vunpack.c.l.b16 %v350
    %v390 = vunpack.c.l.b16 %v351
    %v391 = vunpack.c.l.b16 %v352
    %v392 = vpack.c.b16 %v377, %v376
    %v393 = vpack.c.b16 %v379, %v378
    %v394 = vpack.c.b16 %v381, %v380
    %v395 = vpack.c.b16 %v383, %v382
    %v396 = vpack.c.b16 %v385, %v384
    %v397 = vpack.c.b16 %v387, %v386
    %v398 = vpack.c.b16 %v389, %v388
    %v399 = vpack.c.b16 %v391, %v390
    %408 = vmatprep.subr.bf16.mxu0 0
    %409 = vmatpush1.bf16.msra.mxu0 %v392
    %410 = vmatprep.subr.bf16.mxu0 0
    %411 = vmatpush1.bf16.msra.mxu0 %v393
    %412 = vmatprep.subr.bf16.mxu0 0
    %413 = vmatpush1.bf16.msra.mxu0 %v394
    %414 = vmatprep.subr.bf16.mxu0 0
    %415 = vmatpush1.bf16.msra.mxu0 %v395
    %416 = vmatprep.subr.bf16.mxu0 0
    %417 = vmatpush1.bf16.msra.mxu0 %v396
    %418 = vmatprep.subr.bf16.mxu0 0
    %419 = vmatpush1.bf16.msra.mxu0 %v397
    %420 = vmatprep.subr.bf16.mxu0 0
    %421 = vmatpush1.bf16.msra.mxu0 %v398
    %422 = vmatprep.subr.bf16.mxu0 0
    %423 = vmatpush1.bf16.msra.mxu0 %v399
    %424 = vmatprep.subr.bf16.mxu0 0
    %425 = vmatpush1.bf16.msra.mxu0 0
    %426 = vmatprep.subr.bf16.mxu0 0
    %427 = vmatpush1.bf16.msra.mxu0 0
    %428 = vmatprep.subr.bf16.mxu0 0
    %429 = vmatpush1.bf16.msra.mxu0 0
    %430 = vmatprep.subr.bf16.mxu0 0
    %431 = vmatpush1.bf16.msra.mxu0 0
    %432 = vmatprep.subr.bf16.mxu0 0
    %433 = vmatpush1.bf16.msra.mxu0 0
    %434 = vmatprep.subr.bf16.mxu0 0
    %435 = vmatpush1.bf16.msra.mxu0 0
    %436 = vmatprep.subr.bf16.mxu0 0
    %437 = vmatpush1.bf16.msra.mxu0 0
    %438 = vmatprep.subr.bf16.mxu0 0
    %439 = vmatpush1.bf16.msra.mxu0 0
    %440 = vmatprep.mubr.bf16.mxu0 0
    %441 = vmatmul.mubr.bf16.gmra.mrb[0].mxu0 %v336
    %v442 = vpop.f32.mrb[0].mxu0
    %v443 = vadd.f32 %v358, %v442
    %v444 = vpop.f32.mrb[0].mxu0
    %v445 = vpop.f32.mrb[0].mxu0
    %v446 = vpop.f32.mrb[0].mxu0
    %447 = vdwg.mxu0
    %448 = vst [vmem:[#allocation7] sm:$0xff] %v443
    // Predicated region
    $region34: #{tpu_custom_call.1} parent=1 // pred_check
      _
    $region35: #{tpu_custom_call.1} parent=1 // pred_check_branch
      %450 = sbr.rel (0) target = $region37
    $region36: #{tpu_custom_call.1} parent=1 // pred_region
      %s452 = ssub.s32 128, 128
      %453 = vsyncadd [#allocation4], %s452
      %s455 = sshll.u32 [#allocation7], 4
      %s456 = int_to_ptr.vmem [resolvable:$true] %s455
      %458 = dma.vmem_to_hbm [thread:$0]  %s456, 128, %s6, [#allocation4]
    $region37: #{tpu_custom_call.1} parent=1 // pred_fallthru
      _
    // Predicated region
    $region38: #{tpu_custom_call.1} parent=1 // pred_check
      _
    $region39: #{tpu_custom_call.1} parent=1 // pred_check_branch
      %460 = sbr.rel (0) target = $region41
    $region40: #{tpu_custom_call.1} parent=1 // pred_region
      %461 = dma.done [#allocation4], 128
    $region41: #{tpu_custom_call.1} parent=1 // pred_fallthru
      _
    %462 = vsyncpa [#allocation3], 1
    %463 = vsyncpa [#allocation6], 1
    %464 = vsyncpa [#allocation4], 1

</llo_original>
